<compile_context>
chip_gen: v6e
topology: v6e:2x2x1
jax: 0.10.0
libtpu: 0.0.40
codegen_flags: <defaults>
</compile_context>

<pallas_src>
import functools

import jax
import jax.numpy as jnp
from jax import lax
from jax.experimental import pallas as pl
from jax.experimental.pallas import tpu as pltpu


# --------------------------------------------------------------------------
# Generation-aware budgets
# --------------------------------------------------------------------------
def _vmem_plan():
    """Returns (per-block tile budget bytes, vmem_limit_bytes)."""
    vmem_phys = 64 * 1024 * 1024                      # conservative default (v7x)
    try:
        vmem_phys = int(pltpu.get_tpu_info().vmem_capacity_bytes)
    except Exception:
        pass
    if vmem_phys >= 96 * 1024 * 1024:                 # v5e / v6e: 128 MiB VMEM
        return 16 * 1024 * 1024, 64 * 1024 * 1024
    return 10 * 1024 * 1024, 48 * 1024 * 1024         # v7x: 64 MiB VMEM


def _lowest(dtype):
    dtype = jnp.dtype(dtype)
    if jnp.issubdtype(dtype, jnp.floating):
        return float("-inf")
    return int(jnp.iinfo(dtype).min)


# --------------------------------------------------------------------------
# Tile planner for a dense 2-D (rows, lanes) problem
# --------------------------------------------------------------------------
def _plan_2d_tiles(rows, lanes, itemsize, budget):
    """Pick (row_tile, lane_tile, lane_grid, ragged).

    lane (last) dim: multiple of 128 or the full extent; exact divisors are
    preferred so the steady state has no ragged block.  ragged=True means the
    last lane block overhangs `lanes` (reads must be masked; OOB output-block
    writes are dropped by Pallas).
    row dim: multiple of the dtype's sublane packing that divides `rows`
    exactly (or the full extent); capped at rows//2 when possible so the
    "parallel" row axis has >=2 blocks for megacore sharing.
    """
    unit = max(8, 32 // itemsize)        # sublane packing: f32->8, bf16->16, i8->32

    def pick_rows(max_rows):
        if rows <= unit or rows % unit != 0:
            return rows                                   # full extent (always legal)
        cap = rows // 2 if rows >= 2 * unit else rows     # leave >=2 blocks if we can
        limit = max(unit, min(max_rows, cap))
        best, t = unit, unit
        while t <= limit:
            if rows % t == 0:
                best = t
            t += unit
        return best

    # Case 1: the whole lane extent fits one block even at the minimum row
    # tile -> fully contiguous DMA, reduction axis collapses, never ragged.
    if min(rows, unit) * lanes * itemsize <= budget:
        row_tile = pick_rows(max(unit, budget // max(1, lanes * itemsize)))
        return row_tile, lanes, 1, False

    # Case 2: tile the lane axis; keep the row tile minimal so each block's
    # per-row HBM segments stay as long (contiguous) as possible.
    row_tile = pick_rows(unit)
    max_lane = max(128, (budget // max(1, row_tile * itemsize)) // 128 * 128)
    if lanes % 128 == 0:
        m = lanes // 128
        cap = max(1, min(m, max_lane // 128))
        best = 1
        for d in range(1, cap + 1):
            if m % d == 0:
                best = d
        return row_tile, 128 * best, m // best, False
    lane_tile = min(max_lane, pl.cdiv(lanes, 128) * 128)
    lane_grid = pl.cdiv(lanes, lane_tile)
    return row_tile, lane_tile, lane_grid, lane_grid * lane_tile != lanes


# --------------------------------------------------------------------------
# Kernel 1: global max over the flattened spatial axis
# --------------------------------------------------------------------------
def _global_max_kernel(x_ref, pooled_ref, *, valid_lanes, ragged):
    # x_ref:      (row_tile, lane_tile)  spatial tile, native dtype
    # pooled_ref: (row_tile, 1)          f32 running max; output block stays
    #             resident across the reduction ("arbitrary") axis, so it is
    #             itself the accumulator.
    k = pl.program_id(1)

    @pl.when(k == 0)
    def _init():
        pooled_ref[...] = jnp.full(pooled_ref.shape, -jnp.inf, jnp.float32)

    x = x_ref[...]
    if ragged:
        # Last spatial block overhangs the array: mask the garbage lanes.
        col = k * x.shape[-1] + lax.broadcasted_iota(jnp.int32, x.shape, 1)
        x = jnp.where(col < valid_lanes, x, jnp.array(_lowest(x.dtype), x.dtype))

    # Max in the native dtype (exact); the per-step cross-lane tail is tiny
    # relative to the many elementwise VPU maxes over a multi-MiB tile and is
    # hidden under the HBM-bound DMA.
    part = jnp.max(x, axis=-1, keepdims=True).astype(jnp.float32)
    pooled_ref[...] = jnp.maximum(pooled_ref[...], part)


# --------------------------------------------------------------------------
# Kernel 2: broadcast per-(n, c_out) scalars to the full spatial extent
# (bilinear upsample from a 1x1 source == constant broadcast)
# --------------------------------------------------------------------------
def _broadcast_kernel(y_ref, o_ref):
    # y_ref: (row_tile, 1) f32 scalars;  o_ref: (row_tile, lane_tile) output.
    o_ref[...] = jnp.broadcast_to(y_ref[...].astype(o_ref.dtype), o_ref.shape)


# --------------------------------------------------------------------------
# Wrapper
# --------------------------------------------------------------------------
def image_pool_forward(x, conv_w, bn_gamma, bn_beta, bn_mean, bn_var, eps=1e-5):
    """x: (N, C_in, H, W);  conv_w: (C_out, C_in) squeezed 1x1-conv weight."""
    N, C_in, H, W = x.shape
    C_out = conv_w.shape[0]
    HW = H * W
    itemsize = jnp.dtype(x.dtype).itemsize
    budget, vmem_limit = _vmem_plan()

    # ---------------- phase 1: global spatial max (Pallas) ------------------
    R = N * C_in
    x2 = x.reshape(R, HW)                       # free reshape; dense 2-D layout
    tr, thw, gk, ragged = _plan_2d_tiles(R, HW, itemsize, budget)
    gr = R // tr

    pooled = pl.pallas_call(
        functools.partial(_global_max_kernel, valid_lanes=HW, ragged=ragged),
        out_shape=jax.ShapeDtypeStruct((R, 1), jnp.float32),
        grid_spec=pltpu.PrefetchScalarGridSpec(
            num_scalar_prefetch=0,
            grid=(gr, gk),
            in_specs=[pl.BlockSpec((tr, thw), lambda r, k: (r, k))],
            out_specs=pl.BlockSpec((tr, 1), lambda r, k: (r, 0)),
        ),
        compiler_params=pltpu.CompilerParams(
            dimension_semantics=("parallel", "arbitrary"),
            vmem_limit_bytes=vmem_limit,
        ),
        cost_estimate=pl.CostEstimate(
            flops=R * HW, transcendentals=0,
            bytes_accessed=R * HW * itemsize + R * 4),
    )(x2)

    # ---------------- tiny epilogue (plain JAX, off any hot path) -----------
    # 1x1 conv + folded eval-mode BN + ReLU on the (N, C_in) pooled vector.
    scale = (bn_gamma.astype(jnp.float32) /
             jnp.sqrt(bn_var.astype(jnp.float32) + eps))           # (C_out,)
    bias = bn_beta.astype(jnp.float32) - bn_mean.astype(jnp.float32) * scale
    wt = conv_w.reshape(C_out, C_in).T.astype(jnp.float32)         # (C_in, C_out)
    y = pooled.reshape(N, C_in) @ wt                               # (N, C_out)
    y = jnp.maximum(y * scale[None, :] + bias[None, :], 0.0)
    y2 = y.reshape(N * C_out, 1)

    # ---------------- phase 2: lane-dense broadcast write (Pallas) ----------
    R2 = N * C_out
    tr2, thw2, gk2, _ = _plan_2d_tiles(R2, HW, itemsize, budget)
    gr2 = R2 // tr2

    out2 = pl.pallas_call(
        _broadcast_kernel,
        out_shape=jax.ShapeDtypeStruct((R2, HW), x.dtype),
        grid_spec=pltpu.PrefetchScalarGridSpec(
            num_scalar_prefetch=0,
            grid=(gr2, gk2),
            in_specs=[pl.BlockSpec((tr2, 1), lambda i, j: (i, 0))],
            out_specs=pl.BlockSpec((tr2, thw2), lambda i, j: (i, j)),
        ),
        compiler_params=pltpu.CompilerParams(
            dimension_semantics=("parallel", "parallel"),  # megacore-shared writes
            vmem_limit_bytes=vmem_limit,
        ),
        cost_estimate=pl.CostEstimate(
            flops=0, transcendentals=0,
            bytes_accessed=R2 * 4 + R2 * HW * itemsize),
    )(y2)

    return out2.reshape(N, C_out, H, W)


# --------------------------------------------------------------------------
# Pure-JAX reference
# --------------------------------------------------------------------------
def image_pool_reference(x, conv_w, bn_gamma, bn_beta, bn_mean, bn_var, eps=1e-5):
    N, C_in, H, W = x.shape
    pooled = jnp.max(x.astype(jnp.float32), axis=(2, 3))          # (N, C_in)
    y = pooled @ conv_w.T.astype(jnp.float32)                     # (N, C_out)
    y = (y - bn_mean) / jnp.sqrt(bn_var + eps) * bn_gamma + bn_beta
    y = jnp.maximum(y, 0.0)
    return jnp.broadcast_to(y[:, :, None, None],
                            (N, conv_w.shape[0], H, W)).astype(x.dtype)


def _run_case(key, N, C_in, C_out, H, W):
    kx, kw, kg, kb, km, kv = jax.random.split(key, 6)
    x = jax.random.normal(kx, (N, C_in, H, W), dtype=jnp.float32)
    conv_w = jax.random.normal(kw, (C_out, C_in), dtype=jnp.float32) * 0.1
    bn_gamma = 1.0 + 0.1 * jax.random.normal(kg, (C_out,), dtype=jnp.float32)
    bn_beta = 0.1 * jax.random.normal(kb, (C_out,), dtype=jnp.float32)
    bn_mean = 0.05 * jax.random.normal(km, (C_out,), dtype=jnp.float32)
    bn_var = 1.0 + 0.1 * jax.random.uniform(kv, (C_out,), dtype=jnp.float32)

    out = image_pool_forward(x, conv_w, bn_gamma, bn_beta, bn_mean, bn_var)
    out = jax.block_until_ready(out)
    ref = image_pool_reference(x, conv_w, bn_gamma, bn_beta, bn_mean, bn_var)
    assert out.shape == (N, C_out, H, W)
    assert jnp.allclose(out, ref, atol=1e-5, rtol=1e-5), "mismatch vs reference"


if __name__ == "__main__":
    key = jax.random.PRNGKey(0)
    k0, k1 = jax.random.split(key)

    # Primary small config implied by the module.
    _run_case(k0, N=2, C_in=4, C_out=8, H=16, W=16)
    # Odd shapes: rows not a multiple of 8, H*W not a multiple of 128.
    _run_case(k1, N=1, C_in=6, C_out=8, H=12, W=12)

    print("KERNEL_OK")
</pallas_src>

<mosaic_0001>
module attributes {stable_mosaic.version = 11 : i64} {
  func.func @_global_max_kernel(%arg0: i32, %arg1: i32, %arg2: memref<8x256xf32, #tpu.memory_space<vmem>>, %arg3: memref<8x1xf32, #tpu.memory_space<vmem>>) attributes {dimension_semantics = [#tpu.dimension_semantics<parallel>, #tpu.dimension_semantics<arbitrary>], iteration_bounds = array<i64: 1, 1>, scalar_prefetch = 0 : i64, scratch_operands = 0 : i64, tpu.core_type = #tpu.core_type<tc>, window_params = [{transform_indices = @transform_0, window_bounds = array<i64: 8, 256>}, {transform_indices = @transform_1, window_bounds = array<i64: 8, 1>}]} {
    %c0_i32 = arith.constant 0 : i32
    %0 = arith.cmpi eq, %arg1, %c0_i32 : i32
    %1 = arith.extui %0 : i1 to i32
    %c0_i32_0 = arith.constant 0 : i32
    %2 = arith.cmpi ne, %1, %c0_i32_0 : i32
    scf.if %2 {
      %cst_6 = arith.constant 0xFF800000 : f32
      %9 = vector.broadcast %cst_6 : f32 to vector<8x1xf32>
      %c0_7 = arith.constant 0 : index
      %c0_8 = arith.constant 0 : index
      %10 = vector.load %arg3[%c0_7, %c0_8] : memref<8x1xf32, #tpu.memory_space<vmem>>, vector<8x1xf32>
      tpu.vector_store %arg3[%c0_7, %c0_8], %9 {strides = array<i32>} : memref<8x1xf32, #tpu.memory_space<vmem>>, vector<8x1xf32>,
    } else {
    }
    %c0 = arith.constant 0 : index
    %c0_1 = arith.constant 0 : index
    %3 = vector.load %arg2[%c0, %c0_1] : memref<8x256xf32, #tpu.memory_space<vmem>>, vector<8x256xf32>
    %cst = arith.constant dense<0xFF800000> : vector<8xf32>
    %4 = vector.multi_reduction <maximumf>, %3, %cst [1] : vector<8x256xf32> to vector<8xf32>
    %5 = vector.shape_cast %4 : vector<8xf32> to vector<8x1xf32>
    %c0_2 = arith.constant 0 : index
    %c0_3 = arith.constant 0 : index
    %6 = vector.load %arg3[%c0_2, %c0_3] : memref<8x1xf32, #tpu.memory_space<vmem>>, vector<8x1xf32>
    %7 = arith.maximumf %6, %5 : vector<8x1xf32>
    %c0_4 = arith.constant 0 : index
    %c0_5 = arith.constant 0 : index
    %8 = vector.load %arg3[%c0_4, %c0_5] : memref<8x1xf32, #tpu.memory_space<vmem>>, vector<8x1xf32>
    tpu.vector_store %arg3[%c0_4, %c0_5], %7 {strides = array<i32>} : memref<8x1xf32, #tpu.memory_space<vmem>>, vector<8x1xf32>,
    return
  }
  func.func @transform_0(%arg0: i32, %arg1: i32) -> (i32, i32) {
    %c0_i32 = arith.constant 0 : i32
    return %arg0, %arg1 : i32, i32
  }
  func.func @transform_1(%arg0: i32, %arg1: i32) -> (i32, i32) {
    %c0_i32 = arith.constant 0 : i32
    %c0_i32_0 = arith.constant 0 : i32
    return %arg0, %c0_i32 : i32, i32
  }
}

</mosaic_0001>

<llo_original>
// kernel: tpu_custom_call.1
$region0: #{tpu_custom_call.1}
  #allocation0 [shape = 'u32[]', space=smem, size = 0x4, offset = 0x4, fixed_abs, tag = 'smem constant byte address 0x4 - core index']
  #allocation1 [shape = 'u32[144,128]{1,0:T(1,128)}', space=vmem, size = 0x12000, scoped, tag = 'internal scratch']
  %s0 = inlined_call_operand.hbm [shape: f32[8,256], index: 0, kind: input, shape index: {}]
  %s1 = inlined_call_operand.vmem [shape: f32[8,1], index: 1, kind: output, shape index: {}]
  %s2 = sld [smem:[#allocation0]]
  $region22: #{tpu_custom_call.1} parent=0
    _
  %s4 = ssub.s32 1, %s2
  %s5 = scalar_select 0, %s4, %s2
  $region1: #{tpu_custom_call.1} parent=0
    #allocation2 [shape = 'u8[8192]{0}', space=vmem, size = 0x2000, scoped, tag = 'input window, operand 0, single buffered']
    #allocation3 [shape = 's32[1]{0}', space=sflag, size = 0x4, scoped, tag = 'scoped memory for tpu_custom_call.1']
    %6 = vsyncpa [#allocation3], 0
    // Predicated region
    $region2: #{tpu_custom_call.1} parent=1 // pred_check
      _
    $region3: #{tpu_custom_call.1} parent=1 // pred_check_branch
      %8 = sbr.rel (0) target = $region5
    $region4: #{tpu_custom_call.1} parent=1 // pred_region
      %s10 = ssub.s32 256, 256
      %11 = vsyncadd [#allocation3], %s10
      %s13 = sshll.u32 [#allocation2], 4
      %s14 = int_to_ptr.vmem [resolvable:$true] %s13
      %16 = dma.hbm_to_vmem [thread:$0]  %s0, 256, %s14, [#allocation3]
    $region5: #{tpu_custom_call.1} parent=1 // pred_fallthru
      _
    // Predicated region
    $region6: #{tpu_custom_call.1} parent=1 // pred_check
      _
    $region7: #{tpu_custom_call.1} parent=1 // pred_check_branch
      %18 = sbr.rel (0) target = $region9
    $region8: #{tpu_custom_call.1} parent=1 // pred_region
      %19 = dma.done [#allocation3], 256
    $region9: #{tpu_custom_call.1} parent=1 // pred_fallthru
      _
    %p20 = scmp.eq.s32.totalorder 0, 0
    // Predicated region
    $region10: #{tpu_custom_call.1} parent=1 // pred_check
      %p21 = pneg %p20
    $region11: #{tpu_custom_call.1} parent=1 // pred_check_branch
      %23 = sbr.rel (%p21) target = $region13
    $region12: #{tpu_custom_call.1} parent=1 // pred_region
      %vm24 = vcmask 7168
      %25 = vst.msk [vmem:[%s1] sm:$0xff] %vm24, -inf
    $region13: #{tpu_custom_call.1} parent=1 // pred_fallthru
      _
    %v26 = vld [vmem:[#allocation2] sm:$0xff]
    %v27 = vld [vmem:[#allocation2 + $0x8] sm:$0xff]
    %v28 = vmax.f32 %v26, %v27
    %29 = vmax.xlane.f32.xlu0 %v28
    %v30 = vpop.xlane.xlu0 %29
    %v31 = vld [vmem:[%s1] sm:$0xff]
    %v32 = vmax.f32 %v31, %v30
    %vm33 = vcmask 7168
    %34 = vst.msk [vmem:[%s1] sm:$0xff] %vm33, %v32
    // Predicated region
    $region14: #{tpu_custom_call.1} parent=1 // pred_check
      _
    $region15: #{tpu_custom_call.1} parent=1 // pred_check_branch
      %36 = sbr.rel (0) target = $region17
    $region16: #{tpu_custom_call.1} parent=1 // pred_region
      _
    $region17: #{tpu_custom_call.1} parent=1 // pred_fallthru
      _
    // Predicated region
    $region18: #{tpu_custom_call.1} parent=1 // pred_check
      _
    $region19: #{tpu_custom_call.1} parent=1 // pred_check_branch
      %38 = sbr.rel (0) target = $region21
    $region20: #{tpu_custom_call.1} parent=1 // pred_region
      _
    $region21: #{tpu_custom_call.1} parent=1 // pred_fallthru
      _
    %39 = vsyncpa [#allocation3], 1

</llo_original>
